<compile_context>
chip_gen: v7x
topology: tpu7x:2x2x1
jax: 0.10.0
libtpu: 0.0.40
codegen_flags: <defaults>
</compile_context>

<pallas_src>
import functools

import jax
import jax.numpy as jnp
import numpy as np
from jax.experimental import pallas as pl
from jax.experimental.pallas import tpu as pltpu


# ---------------- fused Pallas kernel ----------------

def textcnn_fused_kernel(ids_ref, emb_ref, wc_ref, bm_ref, wf_ref, bf_ref, o_ref, *,
                         seq_len, emb_dim, vocab_pad, kmax, outw):
    """Fused embedding lookup + conv branches + masked global max-pool + linear head.

    ids_ref: (tb*L, 1)      int32  flattened (batch, time) token ids
    emb_ref: (Vp, E)        bf16   embedding table (row 0 = padding_idx, zeroed)
    wc_ref : (kmax*E, OUTW) bf16   conv kernels, tap-major rows, branch-major cols
    bm_ref : (L, OUTW)      f32    bias where (t, c) is a valid conv output, -1e30 else
    wf_ref : (OUTW, CP)     f32    fc weight (padded rows/cols = 0)
    bf_ref : (1, CP)        f32    fc bias   (padded cols = 0)
    o_ref  : (tb, CP)       f32    logits (first num_classes columns valid)
    """
    L, E = seq_len, emb_dim
    M = ids_ref.shape[0]                 # tb * L flattened rows
    tb = M // L

    # ---- fused embedding lookup: one-hot (M, Vp) @ table (Vp, E) on the MXU ----
    ids = ids_ref[...]                                            # (M, 1) int32
    onehot = ids == jax.lax.broadcasted_iota(jnp.int32, (M, vocab_pad), 1)
    x = jnp.dot(onehot.astype(jnp.bfloat16), emb_ref[...],
                preferred_element_type=jnp.float32).astype(jnp.bfloat16)   # (M, E) exact

    # ---- conv branches: per-tap accumulation with dense K = E (no 128-lane padding,
    #      no im2col materialization). Tap shift = rotation of the flat (batch, time)
    #      row axis; rows that wrap across a batch only land on time positions that the
    #      bias/mask slab forces to -1e30 for every filter whose taps reach them. ----
    def rot_rows(a, tau):                                         # a[(r + tau) % M]
        return jnp.concatenate([a[tau:, :], a[:tau, :]], axis=0) if tau else a

    y = jnp.dot(x, wc_ref[0:E, :], preferred_element_type=jnp.float32)
    for tau in range(1, kmax):
        y = y + jnp.dot(rot_rows(x, tau), wc_ref[tau * E:(tau + 1) * E, :],
                        preferred_element_type=jnp.float32)       # (M, OUTW) f32

    # ---- f32 epilogue: precomputed additive bias/-1e30 mask, global max-pool over
    #      time, then ReLU (max-then-relu == relu(max(conv)) since relu is monotone) ----
    act = y.reshape(tb, L, outw) + bm_ref[...]
    pooled = jnp.maximum(jnp.max(act, axis=1), 0.0)               # (tb, OUTW) f32

    # ---- classifier head (dropout is identity in eval); pooled stays f32 ----
    o_ref[...] = (jnp.dot(pooled, wf_ref[...], preferred_element_type=jnp.float32)
                  + bf_ref[...])


# ---------------- wrappers ----------------

def _batch_tile(batch):
    """Largest candidate tile dividing `batch` (big MXU M = tb*L, few grid steps); if
    that leaves a single grid program and the tile can be halved while staying
    (8,128)-legal, split so the "parallel" axis has >= 2 programs (both v7x cores)."""
    best = None
    for tb in (512, 256, 128, 64, 32, 16, 8):
        if batch % tb == 0:
            best = tb
            break
    if best is None:
        return batch                       # tiny/odd batch: one full-batch tile
    if batch // best == 1 and best >= 16:
        return best // 2                   # >= 2 grid programs for v7x megacore
    return best


def _vmem_limit_bytes():
    """Generation-gated VMEM cap: v4/v5e/v6e have 128 MiB physical, v7x only 64 MiB."""
    try:
        kind = jax.devices()[0].device_kind.lower()
    except Exception:
        return 32 * 1024 * 1024
    if ("v4" in kind) or ("v5" in kind) or ("v6" in kind):
        return 64 * 1024 * 1024
    return 32 * 1024 * 1024


def textcnn_fused(token_ids, emb, w_conv, biasmask, w_fc, b_fc):
    """token_ids (B, L) int32 -> padded logits (B, CP) f32 via a single pallas_call."""
    B, L = token_ids.shape
    Vp, E = emb.shape
    KE, OUTW = w_conv.shape
    CP = w_fc.shape[1]
    kmax = KE // E
    tb = _batch_tile(B)

    ids_flat = token_ids.reshape(B * L, 1).astype(jnp.int32)

    kern = functools.partial(
        textcnn_fused_kernel,
        seq_len=L, emb_dim=E, vocab_pad=Vp, kmax=kmax, outw=OUTW)

    return pl.pallas_call(
        kern,
        out_shape=jax.ShapeDtypeStruct((B, CP), jnp.float32),
        grid_spec=pltpu.PrefetchScalarGridSpec(
            num_scalar_prefetch=0,
            grid=(B // tb,),
            in_specs=[
                pl.BlockSpec((tb * L, 1), lambda i: (i, 0)),     # token ids
                pl.BlockSpec((Vp, E), lambda i: (0, 0)),         # embedding table
                pl.BlockSpec((KE, OUTW), lambda i: (0, 0)),      # conv weights
                pl.BlockSpec((L, OUTW), lambda i: (0, 0)),       # bias/mask slab
                pl.BlockSpec((OUTW, CP), lambda i: (0, 0)),      # fc weight
                pl.BlockSpec((1, CP), lambda i: (0, 0)),         # fc bias
            ],
            out_specs=pl.BlockSpec((tb, CP), lambda i: (i, 0)),
        ),
        compiler_params=pltpu.CompilerParams(
            dimension_semantics=("parallel",),                   # batch axis
            vmem_limit_bytes=_vmem_limit_bytes(),
        ),
    )(ids_flat, emb, w_conv, biasmask, w_fc, b_fc)


def textcnn_forward(packed, token_ids, *, num_classes):
    """token_ids (B, L) int32 -> logits (B, num_classes) f32 (embedding fused in-kernel)."""
    logits_pad = textcnn_fused(token_ids, packed["embedding"], packed["conv_w"],
                               packed["biasmask"], packed["fc_w"], packed["fc_b"])
    # Dropout: identity in eval mode.
    # TODO(synk): training-mode dropout (random mask + 1/(1-p) scale) not implemented.
    return logits_pad[:, :num_classes]


def pack_params(logical, *, vocab_pad, out_pad, class_pad, kernel_sizes, num_filters,
                seq_len):
    """Zero-pad / re-lay-out PyTorch-style weights into the lane-dense kernel layout.

    Note: the bias/mask slab depends on seq_len (valid conv-output positions per branch).
    """
    Ks, Nf = kernel_sizes, num_filters
    kmax = max(Ks)
    V, E = logical["embedding"].shape
    C = logical["fc_b"].shape[0]
    L = seq_len

    emb = np.zeros((vocab_pad, E), np.float32)
    emb[:V, :] = np.asarray(logical["embedding"], np.float32)
    emb[0] = 0.0                                                  # padding_idx=0

    # conv kernels: dense tap-major rows (kmax*E), branch-major 128-lane columns
    w_conv = np.zeros((kmax * E, out_pad), np.float32)
    for i, (k, w) in enumerate(zip(Ks, logical["conv_w"])):
        w = np.asarray(w, np.float32)                             # (Nf, E, k) torch layout
        for tau in range(k):
            w_conv[tau * E:(tau + 1) * E, i * Nf:(i + 1) * Nf] = w[:, :, tau].T

    # additive bias/mask slab: conv bias at valid (t, c), -1e30 at invalid t / padded cols
    NEG = np.float32(-1e30)
    biasmask = np.full((L, out_pad), NEG, np.float32)
    for i, (k, b) in enumerate(zip(Ks, logical["conv_b"])):
        b = np.asarray(b, np.float32)
        biasmask[:L - k + 1, i * Nf:(i + 1) * Nf] = b[None, :]

    w_fc = np.zeros((out_pad, class_pad), np.float32)
    w_fc[:len(Ks) * Nf, :C] = np.asarray(logical["fc_w"], np.float32)
    b_fc = np.zeros((1, class_pad), np.float32)
    b_fc[0, :C] = np.asarray(logical["fc_b"], np.float32)

    return dict(
        embedding=jnp.asarray(emb, jnp.bfloat16),
        conv_w=jnp.asarray(w_conv, jnp.bfloat16),
        biasmask=jnp.asarray(biasmask, jnp.float32),
        fc_w=jnp.asarray(w_fc, jnp.float32),
        fc_b=jnp.asarray(b_fc, jnp.float32),
    )


# ---------------- pure-JAX reference (same bf16 params, f32 math) ----------------

def textcnn_reference(logical, token_ids):
    hp = jax.lax.Precision.HIGHEST
    x = logical["embedding"].astype(jnp.float32)[token_ids]              # (B, L, E)
    L = x.shape[1]
    feats = []
    for w, b in zip(logical["conv_w"], logical["conv_b"]):               # w: (Nf, E, k)
        w = w.astype(jnp.float32)
        k = w.shape[2]
        lout = L - k + 1
        y = b.astype(jnp.float32)[None, None, :]
        for tau in range(k):
            y = y + jnp.einsum("ble,ne->bln", x[:, tau:tau + lout, :], w[:, :, tau],
                               precision=hp)
        # PyTorch: relu(max_t(conv))  (== max_t then relu since relu is monotone)
        feats.append(jnp.maximum(jnp.max(y, axis=1), 0.0))
    x_cat = jnp.concatenate(feats, axis=1)
    return (jnp.dot(x_cat, logical["fc_w"].astype(jnp.float32), precision=hp)
            + logical["fc_b"].astype(jnp.float32)[None, :])


# ---------------- main ----------------

if __name__ == "__main__":
    # config (small, consistent with the module)
    V, E, Nf, Ks, C = 50, 32, 16, (3, 4, 5), 8
    B, L = 2, 16
    VP, OUTW, CP = 128, 128, 128          # padded vocab / pooled-feature / class lanes

    keys = jax.random.split(jax.random.PRNGKey(0), 4 + 2 * len(Ks))
    k_emb, k_tok, k_fcw, k_fcb = keys[0], keys[1], keys[2], keys[3]

    emb = 0.1 * jax.random.normal(k_emb, (V, E), jnp.float32)
    emb = emb.at[0].set(0.0)                                      # padding_idx=0

    conv_w, conv_b = [], []
    for i, k in enumerate(Ks):
        conv_w.append(0.1 * jax.random.normal(keys[4 + 2 * i], (Nf, E, k), jnp.float32))
        conv_b.append(0.1 * jax.random.normal(keys[5 + 2 * i], (Nf,), jnp.float32))
    fc_w = 0.1 * jax.random.normal(k_fcw, (len(Ks) * Nf, C), jnp.float32)
    fc_b = 0.1 * jax.random.normal(k_fcb, (C,), jnp.float32)

    # model parameters live in bf16 (f32 biases/head); the reference upcasts the same values.
    logical = dict(
        embedding=emb.astype(jnp.bfloat16),
        conv_w=[w.astype(jnp.bfloat16) for w in conv_w],
        conv_b=[b.astype(jnp.float32) for b in conv_b],
        fc_w=fc_w.astype(jnp.bfloat16),
        fc_b=fc_b.astype(jnp.float32),
    )
    packed = pack_params(logical, vocab_pad=VP, out_pad=OUTW, class_pad=CP,
                         kernel_sizes=Ks, num_filters=Nf, seq_len=L)

    token_ids = jax.random.randint(k_tok, (B, L), 0, V, dtype=jnp.int32)

    fwd = jax.jit(functools.partial(textcnn_forward, num_classes=C))
    out = jax.block_until_ready(fwd(packed, token_ids))
    ref = jax.block_until_ready(textcnn_reference(logical, token_ids))

    assert out.shape == (B, C), out.shape
    np.testing.assert_allclose(np.asarray(out, np.float32), np.asarray(ref, np.float32),
                               rtol=2e-2, atol=5e-3)
    print("KERNEL_OK")
</pallas_src>

<mosaic_0001>
module attributes {stable_mosaic.version = 11 : i64} {
  func.func @textcnn_fused_kernel(%arg0: i32, %arg1: memref<32x1xi32, #tpu.memory_space<vmem>>, %arg2: memref<128x32xbf16, #tpu.memory_space<vmem>>, %arg3: memref<160x128xbf16, #tpu.memory_space<vmem>>, %arg4: memref<16x128xf32, #tpu.memory_space<vmem>>, %arg5: memref<128x128xf32, #tpu.memory_space<vmem>>, %arg6: memref<1x128xf32, #tpu.memory_space<vmem>>, %arg7: memref<2x128xf32, #tpu.memory_space<vmem>>) attributes {dimension_semantics = [#tpu.dimension_semantics<parallel>], iteration_bounds = array<i64: 1>, scalar_prefetch = 0 : i64, scratch_operands = 0 : i64, tpu.core_type = #tpu.core_type<tc>, window_params = [{transform_indices = @transform_0, window_bounds = array<i64: 32, 1>}, {pipeline_mode = #tpu.pipeline_mode<synchronous>, transform_indices = @transform_1, window_bounds = array<i64: 128, 32>}, {pipeline_mode = #tpu.pipeline_mode<synchronous>, transform_indices = @transform_2, window_bounds = array<i64: 160, 128>}, {pipeline_mode = #tpu.pipeline_mode<synchronous>, transform_indices = @transform_3, window_bounds = array<i64: 16, 128>}, {pipeline_mode = #tpu.pipeline_mode<synchronous>, transform_indices = @transform_4, window_bounds = array<i64: 128, 128>}, {pipeline_mode = #tpu.pipeline_mode<synchronous>, transform_indices = @transform_5, window_bounds = array<i64: 1, 128>}, {transform_indices = @transform_6, window_bounds = array<i64: 2, 128>}]} {
    %c0 = arith.constant 0 : index
    %c0_0 = arith.constant 0 : index
    %0 = vector.load %arg1[%c0, %c0_0] : memref<32x1xi32, #tpu.memory_space<vmem>>, vector<32x1xi32>
    %1 = tpu.iota {dimensions = array<i32: 1>} : vector<32x128xi32>
    %2 = vector.broadcast %0 : vector<32x1xi32> to vector<32x128xi32>
    %3 = arith.cmpi eq, %2, %1 : vector<32x128xi32>
    %4 = arith.extui %3 : vector<32x128xi1> to vector<32x128xi32>
    %5 = arith.sitofp %4 : vector<32x128xi32> to vector<32x128xf32>
    %6 = arith.truncf %5 : vector<32x128xf32> to vector<32x128xbf16>
    %c0_1 = arith.constant 0 : index
    %c0_2 = arith.constant 0 : index
    %7 = vector.load %arg2[%c0_1, %c0_2] : memref<128x32xbf16, #tpu.memory_space<vmem>>, vector<128x32xbf16>
    %cst = arith.constant dense<0.000000e+00> : vector<32x32xf32>
    %8 = tpu.matmul %6, %7, %cst {dimension_numbers = #tpu.dot_dimension_numbers<[1], [0], [0], [1], [0, 0, 1, 1], [], []>} : vector<32x128xbf16>, vector<128x32xbf16>, vector<32x32xf32> -> vector<32x32xf32>
    %9 = arith.truncf %8 : vector<32x32xf32> to vector<32x32xbf16>
    %c0_3 = arith.constant 0 : index
    %c0_4 = arith.constant 0 : index
    %10 = vector.load %arg3[%c0_3, %c0_4] : memref<160x128xbf16, #tpu.memory_space<vmem>>, vector<32x128xbf16>
    %cst_5 = arith.constant dense<0.000000e+00> : vector<32x128xf32>
    %11 = tpu.matmul %9, %10, %cst_5 {dimension_numbers = #tpu.dot_dimension_numbers<[1], [0], [0], [1], [0, 0, 1, 1], [], []>} : vector<32x32xbf16>, vector<32x128xbf16>, vector<32x128xf32> -> vector<32x128xf32>
    %12 = vector.extract_strided_slice %9 {offsets = [1, 0], sizes = [31, 32], strides = [1, 1]} : vector<32x32xbf16> to vector<31x32xbf16>
    %13 = vector.extract_strided_slice %9 {offsets = [0, 0], sizes = [1, 32], strides = [1, 1]} : vector<32x32xbf16> to vector<1x32xbf16>
    %14 = tpu.concatenate %12, %13 in 0 : vector<31x32xbf16>, vector<1x32xbf16> -> vector<32x32xbf16>
    %c32 = arith.constant 32 : index
    %c0_6 = arith.constant 0 : index
    %15 = vector.load %arg3[%c32, %c0_6] : memref<160x128xbf16, #tpu.memory_space<vmem>>, vector<32x128xbf16>
    %cst_7 = arith.constant dense<0.000000e+00> : vector<32x128xf32>
    %16 = tpu.matmul %14, %15, %cst_7 {dimension_numbers = #tpu.dot_dimension_numbers<[1], [0], [0], [1], [0, 0, 1, 1], [], []>} : vector<32x32xbf16>, vector<32x128xbf16>, vector<32x128xf32> -> vector<32x128xf32>
    %17 = arith.addf %11, %16 : vector<32x128xf32>
    %18 = vector.extract_strided_slice %9 {offsets = [2, 0], sizes = [30, 32], strides = [1, 1]} : vector<32x32xbf16> to vector<30x32xbf16>
    %19 = vector.extract_strided_slice %9 {offsets = [0, 0], sizes = [2, 32], strides = [1, 1]} : vector<32x32xbf16> to vector<2x32xbf16>
    %20 = tpu.concatenate %18, %19 in 0 : vector<30x32xbf16>, vector<2x32xbf16> -> vector<32x32xbf16>
    %c64 = arith.constant 64 : index
    %c0_8 = arith.constant 0 : index
    %21 = vector.load %arg3[%c64, %c0_8] : memref<160x128xbf16, #tpu.memory_space<vmem>>, vector<32x128xbf16>
    %cst_9 = arith.constant dense<0.000000e+00> : vector<32x128xf32>
    %22 = tpu.matmul %20, %21, %cst_9 {dimension_numbers = #tpu.dot_dimension_numbers<[1], [0], [0], [1], [0, 0, 1, 1], [], []>} : vector<32x32xbf16>, vector<32x128xbf16>, vector<32x128xf32> -> vector<32x128xf32>
    %23 = arith.addf %17, %22 : vector<32x128xf32>
    %24 = vector.extract_strided_slice %9 {offsets = [3, 0], sizes = [29, 32], strides = [1, 1]} : vector<32x32xbf16> to vector<29x32xbf16>
    %25 = vector.extract_strided_slice %9 {offsets = [0, 0], sizes = [3, 32], strides = [1, 1]} : vector<32x32xbf16> to vector<3x32xbf16>
    %26 = tpu.concatenate %24, %25 in 0 : vector<29x32xbf16>, vector<3x32xbf16> -> vector<32x32xbf16>
    %c96 = arith.constant 96 : index
    %c0_10 = arith.constant 0 : index
    %27 = vector.load %arg3[%c96, %c0_10] : memref<160x128xbf16, #tpu.memory_space<vmem>>, vector<32x128xbf16>
    %cst_11 = arith.constant dense<0.000000e+00> : vector<32x128xf32>
    %28 = tpu.matmul %26, %27, %cst_11 {dimension_numbers = #tpu.dot_dimension_numbers<[1], [0], [0], [1], [0, 0, 1, 1], [], []>} : vector<32x32xbf16>, vector<32x128xbf16>, vector<32x128xf32> -> vector<32x128xf32>
    %29 = arith.addf %23, %28 : vector<32x128xf32>
    %30 = vector.extract_strided_slice %9 {offsets = [4, 0], sizes = [28, 32], strides = [1, 1]} : vector<32x32xbf16> to vector<28x32xbf16>
    %31 = vector.extract_strided_slice %9 {offsets = [0, 0], sizes = [4, 32], strides = [1, 1]} : vector<32x32xbf16> to vector<4x32xbf16>
    %32 = tpu.concatenate %30, %31 in 0 : vector<28x32xbf16>, vector<4x32xbf16> -> vector<32x32xbf16>
    %c128 = arith.constant 128 : index
    %c0_12 = arith.constant 0 : index
    %33 = vector.load %arg3[%c128, %c0_12] : memref<160x128xbf16, #tpu.memory_space<vmem>>, vector<32x128xbf16>
    %cst_13 = arith.constant dense<0.000000e+00> : vector<32x128xf32>
    %34 = tpu.matmul %32, %33, %cst_13 {dimension_numbers = #tpu.dot_dimension_numbers<[1], [0], [0], [1], [0, 0, 1, 1], [], []>} : vector<32x32xbf16>, vector<32x128xbf16>, vector<32x128xf32> -> vector<32x128xf32>
    %35 = arith.addf %29, %34 : vector<32x128xf32>
    %36 = vector.shape_cast %35 : vector<32x128xf32> to vector<2x16x128xf32>
    %c0_14 = arith.constant 0 : index
    %c0_15 = arith.constant 0 : index
    %37 = vector.load %arg4[%c0_14, %c0_15] : memref<16x128xf32, #tpu.memory_space<vmem>>, vector<16x128xf32>
    %38 = vector.shape_cast %37 : vector<16x128xf32> to vector<1x16x128xf32>
    %39 = vector.broadcast %38 : vector<1x16x128xf32> to vector<2x16x128xf32>
    %40 = arith.addf %36, %39 : vector<2x16x128xf32>
    %cst_16 = arith.constant dense<0xFF800000> : vector<2x128xf32>
    %41 = vector.multi_reduction <maximumf>, %40, %cst_16 [1] : vector<2x16x128xf32> to vector<2x128xf32>
    %cst_17 = arith.constant 0.000000e+00 : f32
    %42 = vector.broadcast %cst_17 : f32 to vector<2x128xf32>
    %43 = arith.maximumf %41, %42 : vector<2x128xf32>
    %c0_18 = arith.constant 0 : index
    %c0_19 = arith.constant 0 : index
    %44 = vector.load %arg5[%c0_18, %c0_19] : memref<128x128xf32, #tpu.memory_space<vmem>>, vector<128x128xf32>
    %cst_20 = arith.constant dense<0.000000e+00> : vector<2x128xf32>
    %45 = tpu.matmul %43, %44, %cst_20 {dimension_numbers = #tpu.dot_dimension_numbers<[1], [0], [0], [1], [0, 0, 1, 1], [], []>} : vector<2x128xf32>, vector<128x128xf32>, vector<2x128xf32> -> vector<2x128xf32>
    %c0_21 = arith.constant 0 : index
    %c0_22 = arith.constant 0 : index
    %46 = vector.load %arg6[%c0_21, %c0_22] : memref<1x128xf32, #tpu.memory_space<vmem>>, vector<1x128xf32>
    %47 = vector.broadcast %46 : vector<1x128xf32> to vector<2x128xf32>
    %48 = arith.addf %45, %47 : vector<2x128xf32>
    %c0_23 = arith.constant 0 : index
    %c0_24 = arith.constant 0 : index
    %49 = vector.load %arg7[%c0_23, %c0_24] : memref<2x128xf32, #tpu.memory_space<vmem>>, vector<2x128xf32>
    tpu.vector_store %arg7[%c0_23, %c0_24], %48 {strides = array<i32>} : memref<2x128xf32, #tpu.memory_space<vmem>>, vector<2x128xf32>,
    return
  }
  func.func @transform_0(%arg0: i32) -> (i32, i32) {
    %c0_i32 = arith.constant 0 : i32
    %c0_i32_0 = arith.constant 0 : i32
    return %arg0, %c0_i32 : i32, i32
  }
  func.func @transform_1(%arg0: i32) -> (i32, i32) {
    %c0_i32 = arith.constant 0 : i32
    %c0_i32_0 = arith.constant 0 : i32
    %c0_i32_1 = arith.constant 0 : i32
    return %c0_i32, %c0_i32_0 : i32, i32
  }
  func.func @transform_2(%arg0: i32) -> (i32, i32) {
    %c0_i32 = arith.constant 0 : i32
    %c0_i32_0 = arith.constant 0 : i32
    %c0_i32_1 = arith.constant 0 : i32
    return %c0_i32, %c0_i32_0 : i32, i32
  }
  func.func @transform_3(%arg0: i32) -> (i32, i32) {
    %c0_i32 = arith.constant 0 : i32
    %c0_i32_0 = arith.constant 0 : i32
    %c0_i32_1 = arith.constant 0 : i32
    return %c0_i32, %c0_i32_0 : i32, i32
  }
  func.func @transform_4(%arg0: i32) -> (i32, i32) {
    %c0_i32 = arith.constant 0 : i32
    %c0_i32_0 = arith.constant 0 : i32
    %c0_i32_1 = arith.constant 0 : i32
    return %c0_i32, %c0_i32_0 : i32, i32
  }
  func.func @transform_5(%arg0: i32) -> (i32, i32) {
    %c0_i32 = arith.constant 0 : i32
    %c0_i32_0 = arith.constant 0 : i32
    %c0_i32_1 = arith.constant 0 : i32
    return %c0_i32, %c0_i32_0 : i32, i32
  }
  func.func @transform_6(%arg0: i32) -> (i32, i32) {
    %c0_i32 = arith.constant 0 : i32
    %c0_i32_0 = arith.constant 0 : i32
    return %arg0, %c0_i32 : i32, i32
  }
}

</mosaic_0001>

<llo_original>
// kernel: textcnn_forward.1
$region0: #{textcnn_forward.1}
  #allocation0 [shape = 'u32[]', space=smem, size = 0x4, offset = 0x4, fixed_abs, tag = 'smem constant byte address 0x4 - core index']
  #allocation1 [shape = 'u32[144,128]{1,0:T(1,128)}', space=vmem, size = 0x12000, scoped, tag = 'internal scratch']
  %s0 = inlined_call_operand.vmem [shape: s32[32,1], index: 0, kind: input, shape index: {}]
  %s1 = inlined_call_operand.vmem [shape: bf16[128,32], index: 1, kind: input, shape index: {}]
  %s2 = inlined_call_operand.hbm [shape: bf16[160,128], index: 2, kind: input, shape index: {}]
  %s3 = inlined_call_operand.hbm [shape: f32[16,128], index: 3, kind: input, shape index: {}]
  %s4 = inlined_call_operand.vmem [shape: f32[128,128], index: 4, kind: input, shape index: {}]
  %s5 = inlined_call_operand.vmem [shape: f32[1,128], index: 5, kind: input, shape index: {}]
  %s6 = inlined_call_operand.hbm [shape: f32[2,128], index: 6, kind: output, shape index: {}]
  %s7 = sld [smem:[#allocation0]]
  $region42: #{textcnn_forward.1} parent=0
    _
  %s9 = ssub.s32 1, %s7
  %s10 = scalar_select 0, %s9, %s7
  $region1: #{textcnn_forward.1} parent=0
    #allocation2 [shape = 'u8[40960]{0}', space=vmem, size = 0xa000, scoped, tag = 'input window, operand 2, single buffered']
    #allocation3 [shape = 's32[1]{0}', space=sflag, size = 0x4, scoped, tag = 'scoped memory for textcnn_forward.1']
    #allocation4 [shape = 's32[1]{0}', space=sflag, size = 0x4, scoped, tag = 'scoped memory for textcnn_forward.1']
    #allocation5 [shape = 'u8[8192]{0}', space=vmem, size = 0x2000, scoped, tag = 'input window, operand 3, single buffered']
    #allocation6 [shape = 's32[1]{0}', space=sflag, size = 0x4, scoped, tag = 'scoped memory for textcnn_forward.1']
    #allocation7 [shape = 'u8[1024]{0}', space=vmem, size = 0x400, scoped, tag = 'output window, operand 0, single buffered']
    %11 = vsyncpa [#allocation3], 0
    %12 = vsyncpa [#allocation6], 0
    %13 = vsyncpa [#allocation4], 0
    // Predicated region
    $region2: #{textcnn_forward.1} parent=1 // pred_check
      _
    $region3: #{textcnn_forward.1} parent=1 // pred_check_branch
      %15 = sbr.rel (0) target = $region5
    $region4: #{textcnn_forward.1} parent=1 // pred_region
      _
    $region5: #{textcnn_forward.1} parent=1 // pred_fallthru
      _
    // Predicated region
    $region6: #{textcnn_forward.1} parent=1 // pred_check
      _
    $region7: #{textcnn_forward.1} parent=1 // pred_check_branch
      %17 = sbr.rel (0) target = $region9
    $region8: #{textcnn_forward.1} parent=1 // pred_region
      _
    $region9: #{textcnn_forward.1} parent=1 // pred_fallthru
      _
    // Predicated region
    $region10: #{textcnn_forward.1} parent=1 // pred_check
      _
    $region11: #{textcnn_forward.1} parent=1 // pred_check_branch
      %19 = sbr.rel (0) target = $region13
    $region12: #{textcnn_forward.1} parent=1 // pred_region
      %s21 = ssub.s32 1280, 1280
      %22 = vsyncadd [#allocation3], %s21
      %s23 = sshll.u32 [#allocation2], 4
      %s24 = int_to_ptr.vmem [resolvable:$true] %s23
      %29 = dma.hbm_to_vmem [thread:$0]  %s2, 1280, %s24, [#allocation3], 64, 64, 4
    $region13: #{textcnn_forward.1} parent=1 // pred_fallthru
      _
    // Predicated region
    $region14: #{textcnn_forward.1} parent=1 // pred_check
      _
    $region15: #{textcnn_forward.1} parent=1 // pred_check_branch
      %31 = sbr.rel (0) target = $region17
    $region16: #{textcnn_forward.1} parent=1 // pred_region
      %s33 = ssub.s32 256, 256
      %34 = vsyncadd [#allocation6], %s33
      %s35 = sshll.u32 [#allocation5], 4
      %s36 = int_to_ptr.vmem [resolvable:$true] %s35
      %41 = dma.hbm_to_vmem [thread:$0]  %s3, 256, %s36, [#allocation6], 128, 128, 8
    $region17: #{textcnn_forward.1} parent=1 // pred_fallthru
      _
    // Predicated region
    $region18: #{textcnn_forward.1} parent=1 // pred_check
      _
    $region19: #{textcnn_forward.1} parent=1 // pred_check_branch
      %43 = sbr.rel (0) target = $region21
    $region20: #{textcnn_forward.1} parent=1 // pred_region
      _
    $region21: #{textcnn_forward.1} parent=1 // pred_fallthru
      _
    // Predicated region
    $region22: #{textcnn_forward.1} parent=1 // pred_check
      _
    $region23: #{textcnn_forward.1} parent=1 // pred_check_branch
      %45 = sbr.rel (0) target = $region25
    $region24: #{textcnn_forward.1} parent=1 // pred_region
      _
    $region25: #{textcnn_forward.1} parent=1 // pred_fallthru
      _
    // Predicated region
    $region26: #{textcnn_forward.1} parent=1 // pred_check
      _
    $region27: #{textcnn_forward.1} parent=1 // pred_check_branch
      %47 = sbr.rel (0) target = $region29
    $region28: #{textcnn_forward.1} parent=1 // pred_region
      %48 = dma.done [#allocation3], 1280
    $region29: #{textcnn_forward.1} parent=1 // pred_fallthru
      _
    // Predicated region
    $region30: #{textcnn_forward.1} parent=1 // pred_check
      _
    $region31: #{textcnn_forward.1} parent=1 // pred_check_branch
      %50 = sbr.rel (0) target = $region33
    $region32: #{textcnn_forward.1} parent=1 // pred_region
      %51 = dma.done [#allocation6], 256
    $region33: #{textcnn_forward.1} parent=1 // pred_fallthru
      _
    %v53 = vld [vmem:[%s0] sm:$0xff]
    %v54 = vld [vmem:[%s0 + $0x8] sm:$0xff]
    %v55 = vld [vmem:[%s0 + $0x10] sm:$0xff]
    %v56 = vld [vmem:[%s0 + $0x18] sm:$0xff]
    %v57 = vlaneseq
    %v58 = vand.u32 %v57, 127
    %59 = vset.pattern.permute.xlu0 0
    %60 = vperm.xlu0 %59, %v53
    %v61 = vpop.permute.xlu0 %60
    %62 = vset.pattern.permute.xlu0 0
    %63 = vperm.xlu0 %62, %v54
    %v64 = vpop.permute.xlu0 %63
    %65 = vset.pattern.permute.xlu0 0
    %66 = vperm.xlu0 %65, %v55
    %v67 = vpop.permute.xlu0 %66
    %68 = vset.pattern.permute.xlu0 0
    %69 = vperm.xlu0 %68, %v56
    %v70 = vpop.permute.xlu0 %69
    %vm71 = vcmp.eq.s32.totalorder %v61, %v58
    %vm72 = vcmp.eq.s32.totalorder %v64, %v58
    %vm73 = vcmp.eq.s32.totalorder %v67, %v58
    %vm74 = vcmp.eq.s32.totalorder %v70, %v58
    %v75 = vsel %vm71, 1, 0
    %v76 = vsel %vm72, 1, 0
    %v77 = vsel %vm73, 1, 0
    %v78 = vsel %vm74, 1, 0
    %v79 = vcvt.s32.f32 %v75
    %v80 = vcvt.s32.f32 %v76
    %v81 = vcvt.s32.f32 %v77
    %v82 = vcvt.s32.f32 %v78
    %v83 = vpack.c.bf16 %v80, %v79
    %v84 = vpack.c.bf16 %v82, %v81
    %v85 = vld [vmem:[%s1] sm:$0xf]
    %v86 = vld [vmem:[%s1 + $0x4] sm:$0xf]
    %v87 = vld [vmem:[%s1 + $0x8] sm:$0xf]
    %v88 = vld [vmem:[%s1 + $0xc] sm:$0xf]
    %v89 = vld [vmem:[%s1 + $0x10] sm:$0xf]
    %v90 = vld [vmem:[%s1 + $0x14] sm:$0xf]
    %v91 = vld [vmem:[%s1 + $0x18] sm:$0xf]
    %v92 = vld [vmem:[%s1 + $0x1c] sm:$0xf]
    %v93 = vld [vmem:[%s1 + $0x20] sm:$0xf]
    %v94 = vld [vmem:[%s1 + $0x24] sm:$0xf]
    %v95 = vld [vmem:[%s1 + $0x28] sm:$0xf]
    %v96 = vld [vmem:[%s1 + $0x2c] sm:$0xf]
    %v97 = vld [vmem:[%s1 + $0x30] sm:$0xf]
    %v98 = vld [vmem:[%s1 + $0x34] sm:$0xf]
    %v99 = vld [vmem:[%s1 + $0x38] sm:$0xf]
    %v100 = vld [vmem:[%s1 + $0x3c] sm:$0xf]
    %v117 = vunpack.c.l.b16 %v85
    %v118 = vunpack.c.l.b16 %v86
    %v119 = vunpack.c.l.b16 %v87
    %v120 = vunpack.c.l.b16 %v88
    %v121 = vunpack.c.l.b16 %v89
    %v122 = vunpack.c.l.b16 %v90
    %v123 = vunpack.c.l.b16 %v91
    %v124 = vunpack.c.l.b16 %v92
    %v125 = vunpack.c.l.b16 %v93
    %v126 = vunpack.c.l.b16 %v94
    %v127 = vunpack.c.l.b16 %v95
    %v128 = vunpack.c.l.b16 %v96
    %v129 = vunpack.c.l.b16 %v97
    %v130 = vunpack.c.l.b16 %v98
    %v131 = vunpack.c.l.b16 %v99
    %v132 = vunpack.c.l.b16 %v100
    %v133 = vpack.c.b16 %v118, %v117
    %v134 = vpack.c.b16 %v120, %v119
    %v135 = vpack.c.b16 %v122, %v121
    %v136 = vpack.c.b16 %v124, %v123
    %v137 = vpack.c.b16 %v126, %v125
    %v138 = vpack.c.b16 %v128, %v127
    %v139 = vpack.c.b16 %v130, %v129
    %v140 = vpack.c.b16 %v132, %v131
    %149 = vmatprep.subr.bf16.mxu0 0
    %150 = vmatpush1.bf16.msra.mxu0 %v133
    %151 = vmatprep.subr.bf16.mxu0 0
    %152 = vmatpush1.bf16.msra.mxu0 %v134
    %153 = vmatprep.subr.bf16.mxu0 0
    %154 = vmatpush1.bf16.msra.mxu0 %v135
    %155 = vmatprep.subr.bf16.mxu0 0
    %156 = vmatpush1.bf16.msra.mxu0 %v136
    %157 = vmatprep.subr.bf16.mxu0 0
    %158 = vmatpush1.bf16.msra.mxu0 %v137
    %159 = vmatprep.subr.bf16.mxu0 0
    %160 = vmatpush1.bf16.msra.mxu0 %v138
    %161 = vmatprep.subr.bf16.mxu0 0
    %162 = vmatpush1.bf16.msra.mxu0 %v139
    %163 = vmatprep.subr.bf16.mxu0 0
    %164 = vmatpush1.bf16.msra.mxu0 %v140
    %165 = vmatprep.subr.bf16.mxu0 0
    %166 = vmatpush1.bf16.msra.mxu0 0
    %167 = vmatprep.subr.bf16.mxu0 0
    %168 = vmatpush1.bf16.msra.mxu0 0
    %169 = vmatprep.subr.bf16.mxu0 0
    %170 = vmatpush1.bf16.msra.mxu0 0
    %171 = vmatprep.subr.bf16.mxu0 0
    %172 = vmatpush1.bf16.msra.mxu0 0
    %173 = vmatprep.subr.bf16.mxu0 0
    %174 = vmatpush1.bf16.msra.mxu0 0
    %175 = vmatprep.subr.bf16.mxu0 0
    %176 = vmatpush1.bf16.msra.mxu0 0
    %177 = vmatprep.subr.bf16.mxu0 0
    %178 = vmatpush1.bf16.msra.mxu0 0
    %179 = vmatprep.subr.bf16.mxu0 0
    %180 = vmatpush1.bf16.msra.mxu0 0
    %181 = vmatprep.mubr.bf16.mxu0 0
    %182 = vmatmul.mubr.bf16.gmra.mrb[0].mxu0 %v83
    %v183 = vpop.f32.mrb[0].mxu0
    %v184 = vadd.f32 0.0, %v183
    %v185 = vpop.f32.mrb[0].mxu0
    %v186 = vpop.f32.mrb[0].mxu0
    %v187 = vadd.f32 0.0, %v186
    %v188 = vpop.f32.mrb[0].mxu0
    %189 = vmatprep.mubr.bf16.mxu0 0
    %190 = vmatmul.mubr.bf16.gmra.mrb[0].mxu0 %v84
    %v191 = vpop.f32.mrb[0].mxu0
    %v192 = vadd.f32 0.0, %v191
    %v193 = vpop.f32.mrb[0].mxu0
    %v194 = vpop.f32.mrb[0].mxu0
    %v195 = vadd.f32 0.0, %v194
    %v196 = vpop.f32.mrb[0].mxu0
    %197 = vdwg.mxu0
    %v198 = vpack.c.bf16 %v187, %v184
    %v199 = vpack.c.bf16 %v195, %v192
    %v200 = vld [vmem:[#allocation2] sm:$0xf]
    %v201 = vld [vmem:[#allocation2 + $0x4] sm:$0xf]
    %v202 = vld [vmem:[#allocation2 + $0x8] sm:$0xf]
    %v203 = vld [vmem:[#allocation2 + $0xc] sm:$0xf]
    %vm204 = vsmask.f32 7424
    %v206 = vshrl.u32 %v198, 16
    %v208 = vshll.u32 %v198, 16
    %v210 = vrot.slane %v208, 1
    %v211 = vor.u32 %v206, %v210
    %v213 = vshll.u32 %v199, 16
    %v215 = vrot.slane %v213, 1
    %v216 = vsel %vm204, %v211, %v215
    %v217 = vshrl.u32 %v199, 16
    %v219 = vor.u32 %v217, %v215
    %vm222 = vcmask 1047552
    %vm223 = vmand %vm222, %vm204
    %v224 = vsel %vm223, %v219, %v210
    %v225 = vld [vmem:[#allocation2 + $0x10] sm:$0xf]
    %v226 = vld [vmem:[#allocation2 + $0x14] sm:$0xf]
    %v227 = vld [vmem:[#allocation2 + $0x18] sm:$0xf]
    %v228 = vld [vmem:[#allocation2 + $0x1c] sm:$0xf]
    %v233 = vunpack.c.l.b16 %v225
    %v234 = vunpack.c.l.b16 %v226
    %v235 = vunpack.c.l.b16 %v227
    %v236 = vunpack.c.l.b16 %v228
    %v237 = vpack.c.b16 %v234, %v233
    %v238 = vpack.c.b16 %v236, %v235
    %vm241 = vcmask 261120
    %v243 = vsel %vm241, %v216, 0
    %v246 = vsel %vm241, %v224, 0
    %248 = vmatprep.subr.bf16.mxu0 0
    %249 = vmatpush1.bf16.msra.mxu0 %v237
    %250 = vmatprep.subr.bf16.mxu0 0
    %251 = vmatpush1.bf16.msra.mxu0 %v238
    %252 = vmatprep.subr.bf16.mxu0 0
    %253 = vmatpush1.bf16.msra.mxu0 0
    %254 = vmatprep.subr.bf16.mxu0 0
    %255 = vmatpush1.bf16.msra.mxu0 0
    %256 = vmatprep.subr.bf16.mxu0 0
    %257 = vmatpush1.bf16.msra.mxu0 0
    %258 = vmatprep.subr.bf16.mxu0 0
    %259 = vmatpush1.bf16.msra.mxu0 0
    %260 = vmatprep.subr.bf16.mxu0 0
    %261 = vmatpush1.bf16.msra.mxu0 0
    %262 = vmatprep.subr.bf16.mxu0 0
    %263 = vmatpush1.bf16.msra.mxu0 0
    %264 = vmatprep.subr.bf16.mxu0 0
    %265 = vmatpush1.bf16.msra.mxu0 0
    %266 = vmatprep.subr.bf16.mxu0 0
    %267 = vmatpush1.bf16.msra.mxu0 0
    %268 = vmatprep.subr.bf16.mxu0 0
    %269 = vmatpush1.bf16.msra.mxu0 0
    %270 = vmatprep.subr.bf16.mxu0 0
    %271 = vmatpush1.bf16.msra.mxu0 0
    %272 = vmatprep.subr.bf16.mxu0 0
    %273 = vmatpush1.bf16.msra.mxu0 0
    %274 = vmatprep.subr.bf16.mxu0 0
    %275 = vmatpush1.bf16.msra.mxu0 0
    %276 = vmatprep.subr.bf16.mxu0 0
    %277 = vmatpush1.bf16.msra.mxu0 0
    %278 = vmatprep.subr.bf16.mxu0 0
    %279 = vmatpush1.bf16.msra.mxu0 0
    %280 = vmatprep.mubr.bf16.mxu0 0
    %281 = vmatmul.mubr.bf16.gmra.mrb[0].mxu0 %v243
    %v282 = vpop.f32.mrb[0].mxu0
    %v283 = vadd.f32 0.0, %v282
    %v284 = vpop.f32.mrb[0].mxu0
    %v285 = vpop.f32.mrb[0].mxu0
    %v286 = vadd.f32 0.0, %v285
    %v287 = vpop.f32.mrb[0].mxu0
    %288 = vmatprep.mubr.bf16.mxu0 0
    %289 = vmatmul.mubr.bf16.gmra.mrb[0].mxu0 %v246
    %v290 = vpop.f32.mrb[0].mxu0
    %v291 = vadd.f32 0.0, %v290
    %v292 = vpop.f32.mrb[0].mxu0
    %v293 = vpop.f32.mrb[0].mxu0
    %v294 = vadd.f32 0.0, %v293
    %v295 = vpop.f32.mrb[0].mxu0
    %296 = vdwg.mxu0
    %v301 = vunpack.c.l.b16 %v200
    %v302 = vunpack.c.l.b16 %v201
    %v303 = vunpack.c.l.b16 %v202
    %v304 = vunpack.c.l.b16 %v203
    %v305 = vpack.c.b16 %v302, %v301
    %v306 = vpack.c.b16 %v304, %v303
    %v309 = vsel %vm241, %v198, 0
    %v311 = vsel %vm241, %v199, 0
    %313 = vmatprep.subr.bf16.mxu0 0
    %314 = vmatpush1.bf16.msra.mxu0 %v305
    %315 = vmatprep.subr.bf16.mxu0 0
    %316 = vmatpush1.bf16.msra.mxu0 %v306
    %317 = vmatprep.subr.bf16.mxu0 0
    %318 = vmatpush1.bf16.msra.mxu0 0
    %319 = vmatprep.subr.bf16.mxu0 0
    %320 = vmatpush1.bf16.msra.mxu0 0
    %321 = vmatprep.subr.bf16.mxu0 0
    %322 = vmatpush1.bf16.msra.mxu0 0
    %323 = vmatprep.subr.bf16.mxu0 0
    %324 = vmatpush1.bf16.msra.mxu0 0
    %325 = vmatprep.subr.bf16.mxu0 0
    %326 = vmatpush1.bf16.msra.mxu0 0
    %327 = vmatprep.subr.bf16.mxu0 0
    %328 = vmatpush1.bf16.msra.mxu0 0
    %329 = vmatprep.subr.bf16.mxu0 0
    %330 = vmatpush1.bf16.msra.mxu0 0
    %331 = vmatprep.subr.bf16.mxu0 0
    %332 = vmatpush1.bf16.msra.mxu0 0
    %333 = vmatprep.subr.bf16.mxu0 0
    %334 = vmatpush1.bf16.msra.mxu0 0
    %335 = vmatprep.subr.bf16.mxu0 0
    %336 = vmatpush1.bf16.msra.mxu0 0
    %337 = vmatprep.subr.bf16.mxu0 0
    %338 = vmatpush1.bf16.msra.mxu0 0
    %339 = vmatprep.subr.bf16.mxu0 0
    %340 = vmatpush1.bf16.msra.mxu0 0
    %341 = vmatprep.subr.bf16.mxu0 0
    %342 = vmatpush1.bf16.msra.mxu0 0
    %343 = vmatprep.subr.bf16.mxu0 0
    %344 = vmatpush1.bf16.msra.mxu0 0
    %345 = vmatprep.mubr.bf16.mxu0 0
    %346 = vmatmul.mubr.bf16.gmra.mrb[0].mxu0 %v309
    %v347 = vpop.f32.mrb[0].mxu0
    %v348 = vadd.f32 %v283, %v347
    %v349 = vpop.f32.mrb[0].mxu0
    %v350 = vpop.f32.mrb[0].mxu0
    %v351 = vadd.f32 %v286, %v350
    %v352 = vpop.f32.mrb[0].mxu0
    %353 = vmatprep.mubr.bf16.mxu0 0
    %354 = vmatmul.mubr.bf16.gmra.mrb[0].mxu0 %v311
    %v355 = vpop.f32.mrb[0].mxu0
    %v356 = vadd.f32 %v291, %v355
    %v357 = vpop.f32.mrb[0].mxu0
    %v358 = vpop.f32.mrb[0].mxu0
    %v359 = vadd.f32 %v294, %v358
    %v360 = vpop.f32.mrb[0].mxu0
    %361 = vdwg.mxu0
    %vm364 = vcmask 1046528
    %v365 = vrot.slane %v198, 1
    %v366 = vrot.slane %v199, 1
    %v367 = vsel %vm364, %v365, %v366
    %vm368 = vcmask 1046528
    %v371 = vsel %vm368, %v366, %v365
    %v372 = vld [vmem:[#allocation2 + $0x20] sm:$0xf]
    %v373 = vld [vmem:[#allocation2 + $0x24] sm:$0xf]
    %v374 = vld [vmem:[#allocation2 + $0x28] sm:$0xf]
    %v375 = vld [vmem:[#allocation2 + $0x2c] sm:$0xf]
    %v380 = vunpack.c.l.b16 %v372
    %v381 = vunpack.c.l.b16 %v373
    %v382 = vunpack.c.l.b16 %v374
    %v383 = vunpack.c.l.b16 %v375
    %v384 = vpack.c.b16 %v381, %v380
    %v385 = vpack.c.b16 %v383, %v382
    %v389 = vsel %vm241, %v367, 0
    %v391 = vsel %vm241, %v371, 0
    %393 = vmatprep.subr.bf16.mxu0 0
    %394 = vmatpush1.bf16.msra.mxu0 %v384
    %395 = vmatprep.subr.bf16.mxu0 0
    %396 = vmatpush1.bf16.msra.mxu0 %v385
    %397 = vmatprep.subr.bf16.mxu0 0
    %398 = vmatpush1.bf16.msra.mxu0 0
    %399 = vmatprep.subr.bf16.mxu0 0
    %400 = vmatpush1.bf16.msra.mxu0 0
    %401 = vmatprep.subr.bf16.mxu0 0
    %402 = vmatpush1.bf16.msra.mxu0 0
    %403 = vmatprep.subr.bf16.mxu0 0
    %404 = vmatpush1.bf16.msra.mxu0 0
    %405 = vmatprep.subr.bf16.mxu0 0
    %406 = vmatpush1.bf16.msra.mxu0 0
    %407 = vmatprep.subr.bf16.mxu0 0
    %408 = vmatpush1.bf16.msra.mxu0 0
    %409 = vmatprep.subr.bf16.mxu0 0
    %410 = vmatpush1.bf16.msra.mxu0 0
    %411 = vmatprep.subr.bf16.mxu0 0
    %412 = vmatpush1.bf16.msra.mxu0 0
    %413 = vmatprep.subr.bf16.mxu0 0
    %414 = vmatpush1.bf16.msra.mxu0 0
    %415 = vmatprep.subr.bf16.mxu0 0
    %416 = vmatpush1.bf16.msra.mxu0 0
    %417 = vmatprep.subr.bf16.mxu0 0
    %418 = vmatpush1.bf16.msra.mxu0 0
    %419 = vmatprep.subr.bf16.mxu0 0
    %420 = vmatpush1.bf16.msra.mxu0 0
    %421 = vmatprep.subr.bf16.mxu0 0
    %422 = vmatpush1.bf16.msra.mxu0 0
    %423 = vmatprep.subr.bf16.mxu0 0
    %424 = vmatpush1.bf16.msra.mxu0 0
    %425 = vmatprep.mubr.bf16.mxu0 0
    %426 = vmatmul.mubr.bf16.gmra.mrb[0].mxu0 %v389
    %v427 = vpop.f32.mrb[0].mxu0
    %v428 = vadd.f32 0.0, %v427
    %v429 = vpop.f32.mrb[0].mxu0
    %v430 = vpop.f32.mrb[0].mxu0
    %v431 = vadd.f32 0.0, %v430
    %v432 = vpop.f32.mrb[0].mxu0
    %433 = vmatprep.mubr.bf16.mxu0 0
    %434 = vmatmul.mubr.bf16.gmra.mrb[0].mxu0 %v391
    %v435 = vpop.f32.mrb[0].mxu0
    %v436 = vadd.f32 0.0, %v435
    %v437 = vpop.f32.mrb[0].mxu0
    %v438 = vpop.f32.mrb[0].mxu0
    %v439 = vadd.f32 0.0, %v438
    %v440 = vpop.f32.mrb[0].mxu0
    %441 = vdwg.mxu0
    %v442 = vadd.f32 %v348, %v428
    %v443 = vadd.f32 %v351, %v431
    %v444 = vadd.f32 %v356, %v436
    %v445 = vadd.f32 %v359, %v439
    %vm446 = vsmask.f32 6400
    %v447 = vrot.slane %v206, 1
    %v448 = vrot.slane %v208, 2
    %v449 = vor.u32 %v447, %v448
    %v450 = vrot.slane %v217, 1
    %v451 = vrot.slane %v213, 2
    %v452 = vor.u32 %v450, %v451
    %v453 = vsel %vm446, %v449, %v452
    %vm456 = vmand %vm364, %vm446
    %v457 = vsel %vm456, %v452, %v449
    %v458 = vld [vmem:[#allocation2 + $0x30] sm:$0xf]
    %v459 = vld [vmem:[#allocation2 + $0x34] sm:$0xf]
    %v460 = vld [vmem:[#allocation2 + $0x38] sm:$0xf]
    %v461 = vld [vmem:[#allocation2 + $0x3c] sm:$0xf]
    %v466 = vunpack.c.l.b16 %v458
    %v467 = vunpack.c.l.b16 %v459
    %v468 = vunpack.c.l.b16 %v460
    %v469 = vunpack.c.l.b16 %v461
    %v470 = vpack.c.b16 %v467, %v466
    %v471 = vpack.c.b16 %v469, %v468
    %v475 = vsel %vm241, %v453, 0
    %v478 = vsel %vm241, %v457, 0
    %480 = vmatprep.subr.bf16.mxu0 0
    %481 = vmatpush1.bf16.msra.mxu0 %v470
    %482 = vmatprep.subr.bf16.mxu0 0
    %483 = vmatpush1.bf16.msra.mxu0 %v471
    %484 = vmatprep.subr.bf16.mxu0 0
    %485 = vmatpush1.bf16.msra.mxu0 0
    %486 = vmatprep.subr.bf16.mxu0 0
    %487 = vmatpush1.bf16.msra.mxu0 0
    %488 = vmatprep.subr.bf16.mxu0 0
    %489 = vmatpush1.bf16.msra.mxu0 0
    %490 = vmatprep.subr.bf16.mxu0 0
    %491 = vmatpush1.bf16.msra.mxu0 0
    %492 = vmatprep.subr.bf16.mxu0 0
    %493 = vmatpush1.bf16.msra.mxu0 0
    %494 = vmatprep.subr.bf16.mxu0 0
    %495 = vmatpush1.bf16.msra.mxu0 0
    %496 = vmatprep.subr.bf16.mxu0 0
    %497 = vmatpush1.bf16.msra.mxu0 0
    %498 = vmatprep.subr.bf16.mxu0 0
    %499 = vmatpush1.bf16.msra.mxu0 0
    %500 = vmatprep.subr.bf16.mxu0 0
    %501 = vmatpush1.bf16.msra.mxu0 0
    %502 = vmatprep.subr.bf16.mxu0 0
    %503 = vmatpush1.bf16.msra.mxu0 0
    %504 = vmatprep.subr.bf16.mxu0 0
    %505 = vmatpush1.bf16.msra.mxu0 0
    %506 = vmatprep.subr.bf16.mxu0 0
    %507 = vmatpush1.bf16.msra.mxu0 0
    %508 = vmatprep.subr.bf16.mxu0 0
    %509 = vmatpush1.bf16.msra.mxu0 0
    %510 = vmatprep.subr.bf16.mxu0 0
    %511 = vmatpush1.bf16.msra.mxu0 0
    %512 = vmatprep.mubr.bf16.mxu0 0
    %513 = vmatmul.mubr.bf16.gmra.mrb[0].mxu0 %v475
    %v514 = vpop.f32.mrb[0].mxu0
    %v515 = vadd.f32 0.0, %v514
    %v516 = vpop.f32.mrb[0].mxu0
    %v517 = vpop.f32.mrb[0].mxu0
    %v518 = vadd.f32 0.0, %v517
    %v519 = vpop.f32.mrb[0].mxu0
    %520 = vmatprep.mubr.bf16.mxu0 0
    %521 = vmatmul.mubr.bf16.gmra.mrb[0].mxu0 %v478
    %v522 = vpop.f32.mrb[0].mxu0
    %v523 = vadd.f32 0.0, %v522
    %v524 = vpop.f32.mrb[0].mxu0
    %v525 = vpop.f32.mrb[0].mxu0
    %v526 = vadd.f32 0.0, %v525
    %v527 = vpop.f32.mrb[0].mxu0
    %528 = vdwg.mxu0
    %v529 = vadd.f32 %v442, %v515
    %v530 = vadd.f32 %v443, %v518
    %v531 = vadd.f32 %v444, %v523
    %v532 = vadd.f32 %v445, %v526
    %vm533 = vcmask 1045504
    %v534 = vrot.slane %v198, 2
    %v535 = vrot.slane %v199, 2
    %v536 = vsel %vm533, %v534, %v535
    %vm537 = vcmask 1045504
    %v540 = vsel %vm537, %v535, %v534
    %v541 = vld [vmem:[#allocation2 + $0x40] sm:$0xf]
    %v542 = vld [vmem:[#allocation2 + $0x44] sm:$0xf]
    %v543 = vld [vmem:[#allocation2 + $0x48] sm:$0xf]
    %v544 = vld [vmem:[#allocation2 + $0x4c] sm:$0xf]
    %v549 = vunpack.c.l.b16 %v541
    %v550 = vunpack.c.l.b16 %v542
    %v551 = vunpack.c.l.b16 %v543
    %v552 = vunpack.c.l.b16 %v544
    %v553 = vpack.c.b16 %v550, %v549
    %v554 = vpack.c.b16 %v552, %v551
    %v558 = vsel %vm241, %v536, 0
    %v560 = vsel %vm241, %v540, 0
    %562 = vmatprep.subr.bf16.mxu0 0
    %563 = vmatpush1.bf16.msra.mxu0 %v553
    %564 = vmatprep.subr.bf16.mxu0 0
    %565 = vmatpush1.bf16.msra.mxu0 %v554
    %566 = vmatprep.subr.bf16.mxu0 0
    %567 = vmatpush1.bf16.msra.mxu0 0
    %568 = vmatprep.subr.bf16.mxu0 0
    %569 = vmatpush1.bf16.msra.mxu0 0
    %570 = vmatprep.subr.bf16.mxu0 0
    %571 = vmatpush1.bf16.msra.mxu0 0
    %572 = vmatprep.subr.bf16.mxu0 0
    %573 = vmatpush1.bf16.msra.mxu0 0
    %574 = vmatprep.subr.bf16.mxu0 0
    %575 = vmatpush1.bf16.msra.mxu0 0
    %576 = vmatprep.subr.bf16.mxu0 0
    %577 = vmatpush1.bf16.msra.mxu0 0
    %578 = vmatprep.subr.bf16.mxu0 0
    %579 = vmatpush1.bf16.msra.mxu0 0
    %580 = vmatprep.subr.bf16.mxu0 0
    %581 = vmatpush1.bf16.msra.mxu0 0
    %582 = vmatprep.subr.bf16.mxu0 0
    %583 = vmatpush1.bf16.msra.mxu0 0
    %584 = vmatprep.subr.bf16.mxu0 0
    %585 = vmatpush1.bf16.msra.mxu0 0
    %586 = vmatprep.subr.bf16.mxu0 0
    %587 = vmatpush1.bf16.msra.mxu0 0
    %588 = vmatprep.subr.bf16.mxu0 0
    %589 = vmatpush1.bf16.msra.mxu0 0
    %590 = vmatprep.subr.bf16.mxu0 0
    %591 = vmatpush1.bf16.msra.mxu0 0
    %592 = vmatprep.subr.bf16.mxu0 0
    %593 = vmatpush1.bf16.msra.mxu0 0
    %594 = vmatprep.mubr.bf16.mxu0 0
    %595 = vmatmul.mubr.bf16.gmra.mrb[0].mxu0 %v558
    %v596 = vpop.f32.mrb[0].mxu0
    %v597 = vadd.f32 0.0, %v596
    %v598 = vpop.f32.mrb[0].mxu0
    %v599 = vpop.f32.mrb[0].mxu0
    %v600 = vadd.f32 0.0, %v599
    %v601 = vpop.f32.mrb[0].mxu0
    %602 = vmatprep.mubr.bf16.mxu0 0
    %603 = vmatmul.mubr.bf16.gmra.mrb[0].mxu0 %v560
    %v604 = vpop.f32.mrb[0].mxu0
    %v605 = vadd.f32 0.0, %v604
    %v606 = vpop.f32.mrb[0].mxu0
    %v607 = vpop.f32.mrb[0].mxu0
    %v608 = vadd.f32 0.0, %v607
    %v609 = vpop.f32.mrb[0].mxu0
    %610 = vdwg.mxu0
    %v611 = vadd.f32 %v529, %v597
    %v612 = vadd.f32 %v530, %v600
    %v613 = vadd.f32 %v531, %v605
    %v614 = vadd.f32 %v532, %v608
    %v615 = vld [vmem:[#allocation5] sm:$0xff]
    %v616 = vld [vmem:[#allocation5 + $0x8] sm:$0xff]
    %v617 = vadd.f32 %v611, %v615
    %v618 = vadd.f32 %v612, %v616
    %v619 = vadd.f32 %v613, %v615
    %v620 = vadd.f32 %v614, %v616
    %v621 = vmax.f32 %v617, %v618
    %v622 = vrot.slane %v621, 4
    %v623 = vmax.f32 %v621, %v622
    %v624 = vrot.slane %v623, 2
    %v625 = vmax.f32 %v623, %v624
    %v626 = vrot.slane %v625, 1
    %v627 = vmax.f32 %v625, %v626
    %v628 = vmax.f32 %v619, %v620
    %v629 = vrot.slane %v628, 4
    %v630 = vmax.f32 %v628, %v629
    %v631 = vrot.slane %v630, 2
    %v632 = vmax.f32 %v630, %v631
    %v633 = vrot.slane %v632, 1
    %v634 = vmax.f32 %v632, %v633
    %v635 = vmax.f32 %v627, 0.0
    %v636 = vmax.f32 %v634, 0.0
    %v637 = vld [vmem:[%s4] sm:$0xff]
    %v638 = vld [vmem:[%s4 + $0x8] sm:$0xff]
    %v639 = vld [vmem:[%s4 + $0x10] sm:$0xff]
    %v640 = vld [vmem:[%s4 + $0x18] sm:$0xff]
    %v641 = vld [vmem:[%s4 + $0x20] sm:$0xff]
    %v642 = vld [vmem:[%s4 + $0x28] sm:$0xff]
    %v643 = vld [vmem:[%s4 + $0x30] sm:$0xff]
    %v644 = vld [vmem:[%s4 + $0x38] sm:$0xff]
    %v645 = vld [vmem:[%s4 + $0x40] sm:$0xff]
    %v646 = vld [vmem:[%s4 + $0x48] sm:$0xff]
    %v647 = vld [vmem:[%s4 + $0x50] sm:$0xff]
    %v648 = vld [vmem:[%s4 + $0x58] sm:$0xff]
    %v649 = vld [vmem:[%s4 + $0x60] sm:$0xff]
    %v650 = vld [vmem:[%s4 + $0x68] sm:$0xff]
    %v651 = vld [vmem:[%s4 + $0x70] sm:$0xff]
    %v652 = vld [vmem:[%s4 + $0x78] sm:$0xff]
    %v653 = vld [vmem:[%s5] sm:$0x1]
    %v655 = vlaneseq
    %v656 = vshrl.u32 %v655, 7
    %v657 = vsub.s32 0, %v656
    %v658 = vrot.slane %v653, %v657
    %vm662 = vcmask 1041409
    %v663 = vsel %vm662, %v636, %v635
    %665 = vmatprep.subr.mxu0 0.0
    %666 = vmatpush1.msra.mxu0 %v637
    %667 = vmatprep.subr.mxu0 0.0
    %668 = vmatpush1.msra.mxu0 %v638
    %669 = vmatprep.subr.mxu0 0.0
    %670 = vmatpush1.msra.mxu0 %v639
    %671 = vmatprep.subr.mxu0 0.0
    %672 = vmatpush1.msra.mxu0 %v640
    %673 = vmatprep.subr.mxu0 0.0
    %674 = vmatpush1.msra.mxu0 %v641
    %675 = vmatprep.subr.mxu0 0.0
    %676 = vmatpush1.msra.mxu0 %v642
    %677 = vmatprep.subr.mxu0 0.0
    %678 = vmatpush1.msra.mxu0 %v643
    %679 = vmatprep.subr.mxu0 0.0
    %680 = vmatpush1.msra.mxu0 %v644
    %681 = vmatprep.subr.mxu0 0.0
    %682 = vmatpush1.msra.mxu0 %v645
    %683 = vmatprep.subr.mxu0 0.0
    %684 = vmatpush1.msra.mxu0 %v646
    %685 = vmatprep.subr.mxu0 0.0
    %686 = vmatpush1.msra.mxu0 %v647
    %687 = vmatprep.subr.mxu0 0.0
    %688 = vmatpush1.msra.mxu0 %v648
    %689 = vmatprep.subr.mxu0 0.0
    %690 = vmatpush1.msra.mxu0 %v649
    %691 = vmatprep.subr.mxu0 0.0
    %692 = vmatpush1.msra.mxu0 %v650
    %693 = vmatprep.subr.mxu0 0.0
    %694 = vmatpush1.msra.mxu0 %v651
    %695 = vmatprep.subr.mxu0 0.0
    %696 = vmatpush1.msra.mxu0 %v652
    %697 = vmatprep.subr.mxu0 0.0
    %698 = vmatpush1.msra.mxu0 0.0
    %699 = vmatprep.subr.mxu0 0.0
    %700 = vmatpush1.msra.mxu0 0.0
    %701 = vmatprep.subr.mxu0 0.0
    %702 = vmatpush1.msra.mxu0 0.0
    %703 = vmatprep.subr.mxu0 0.0
    %704 = vmatpush1.msra.mxu0 0.0
    %705 = vmatprep.subr.mxu0 0.0
    %706 = vmatpush1.msra.mxu0 0.0
    %707 = vmatprep.subr.mxu0 0.0
    %708 = vmatpush1.msra.mxu0 0.0
    %709 = vmatprep.subr.mxu0 0.0
    %710 = vmatpush1.msra.mxu0 0.0
    %711 = vmatprep.subr.mxu0 0.0
    %712 = vmatpush1.msra.mxu0 0.0
    %713 = vmatprep.subr.mxu0 0.0
    %714 = vmatpush1.msra.mxu0 0.0
    %715 = vmatprep.subr.mxu0 0.0
    %716 = vmatpush1.msra.mxu0 0.0
    %717 = vmatprep.subr.mxu0 0.0
    %718 = vmatpush1.msra.mxu0 0.0
    %719 = vmatprep.subr.mxu0 0.0
    %720 = vmatpush1.msra.mxu0 0.0
    %721 = vmatprep.subr.mxu0 0.0
    %722 = vmatpush1.msra.mxu0 0.0
    %723 = vmatprep.subr.mxu0 0.0
    %724 = vmatpush1.msra.mxu0 0.0
    %725 = vmatprep.subr.mxu0 0.0
    %726 = vmatpush1.msra.mxu0 0.0
    %727 = vmatprep.subr.mxu0 0.0
    %728 = vmatpush1.msra.mxu0 0.0
    %729 = vmatprep.mubr.f32.mxu0 0.0
    %730 = vmatmul.mubr.f32.gmra.mrb[0].mxu0 %v663
    %v731 = vpop.f32.mrb[0].mxu0
    %v732 = vadd.f32 %v658, %v731
    %v733 = vpop.f32.mrb[0].mxu0
    %734 = vdwg.mxu0
    %735 = vst [vmem:[#allocation7] sm:$0x3] %v732
    // Predicated region
    $region34: #{textcnn_forward.1} parent=1 // pred_check
      _
    $region35: #{textcnn_forward.1} parent=1 // pred_check_branch
      %737 = sbr.rel (0) target = $region37
    $region36: #{textcnn_forward.1} parent=1 // pred_region
      %s739 = ssub.s32 32, 32
      %740 = vsyncadd [#allocation4], %s739
      %s742 = sshll.u32 [#allocation7], 4
      %s743 = int_to_ptr.vmem [resolvable:$true] %s742
      %745 = dma.vmem_to_hbm [thread:$0]  %s743, 32, %s6, [#allocation4]
    $region37: #{textcnn_forward.1} parent=1 // pred_fallthru
      _
    // Predicated region
    $region38: #{textcnn_forward.1} parent=1 // pred_check
      _
    $region39: #{textcnn_forward.1} parent=1 // pred_check_branch
      %747 = sbr.rel (0) target = $region41
    $region40: #{textcnn_forward.1} parent=1 // pred_region
      %748 = dma.done [#allocation4], 32
    $region41: #{textcnn_forward.1} parent=1 // pred_fallthru
      _
    %749 = vsyncpa [#allocation3], 1
    %750 = vsyncpa [#allocation6], 1
    %751 = vsyncpa [#allocation4], 1

</llo_original>
